<compile_context>
chip_gen: v6e
topology: v6e:2x2x1
jax: 0.10.0
libtpu: 0.0.40
codegen_flags: <defaults>
</compile_context>

<pallas_src>
import functools

import jax
import jax.numpy as jnp
from jax import lax
from jax.experimental import pallas as pl
from jax.experimental.pallas import tpu as pltpu

BN_EPS = 1e-5
LEAKY_SLOPE = 0.2
_LANE = 128
_SUBLANE = 8
_STATS_ROWS = 8                     # sublane-padded stats block: [sum, sumsq, 0...]
_VMEM_LIMIT = 32 * 1024 * 1024


def _round_up(x, m):
    return ((x + m - 1) // m) * m


def _lrelu(h):
    return jnp.where(h > 0, h, LEAKY_SLOPE * h)


def _masked(h, n_valid, row_offset, mask_rows):
    """Zero padded batch rows so they do not pollute BatchNorm statistics."""
    if not mask_rows:
        return h
    row = row_offset + lax.broadcasted_iota(jnp.int32, h.shape, 0)
    return jnp.where(row < n_valid, h, 0.0)


# --------------------------------------------------------------------------
# Fused single-tile kernel (whole padded batch resident in VMEM).
# --------------------------------------------------------------------------
def _fused_kernel(x_ref, w1_ref, b1_ref, g1_ref, be1_ref,
                  w2_ref, b2_ref, g2_ref, be2_ref,
                  w3_ref, b3_ref, o_ref, *, n_valid, mask_rows):
    def bn(h, gamma, beta):
        hm = _masked(h, n_valid, 0, mask_rows)
        # One pass: sum and sum-of-squares together; var = E[h^2] - mu^2.
        mu = jnp.sum(hm, axis=0, keepdims=True) / n_valid
        var = jnp.sum(hm * hm, axis=0, keepdims=True) / n_valid - mu * mu
        scale = gamma * lax.rsqrt(var + BN_EPS)
        return h * scale + (beta - mu * scale)

    # layer 1: Linear(in,128) + LeakyReLU + BN
    h = jnp.dot(x_ref[...], w1_ref[...],
                preferred_element_type=jnp.float32) + b1_ref[...]
    h = bn(_lrelu(h), g1_ref[...], be1_ref[...])
    # layer 2: Linear(128,512) + LeakyReLU + BN
    h = jnp.dot(h.astype(jnp.bfloat16), w2_ref[...],
                preferred_element_type=jnp.float32) + b2_ref[...]
    h = bn(_lrelu(h), g2_ref[...], be2_ref[...])
    # layer 3: Linear(512,out)
    out = jnp.dot(h.astype(jnp.bfloat16), w3_ref[...],
                  preferred_element_type=jnp.float32) + b3_ref[...]
    o_ref[...] = out.astype(o_ref.dtype)


# --------------------------------------------------------------------------
# Batch-tiled pipeline kernels.
# --------------------------------------------------------------------------
def _hidden_layer_kernel(x_ref, s_ref, t_ref, w_ref, b_ref, h_ref, st_ref,
                         *, b_tile, n_valid, mask_rows):
    # Apply previous layer's BN as a per-feature affine (identity for layer 1),
    # then Linear + LeakyReLU, emitting per-tile (sum, sumsq) partial stats.
    xn = x_ref[...].astype(jnp.float32) * s_ref[...] + t_ref[...]
    h = jnp.dot(xn.astype(jnp.bfloat16), w_ref[...],
                preferred_element_type=jnp.float32) + b_ref[...]
    h = _lrelu(h)
    hm = _masked(h, n_valid, pl.program_id(0) * b_tile, mask_rows)
    f = h.shape[1]
    moments = jnp.concatenate(
        [jnp.sum(hm, axis=0, keepdims=True),
         jnp.sum(hm * hm, axis=0, keepdims=True),
         jnp.zeros((_STATS_ROWS - 2, f), jnp.float32)], axis=0)
    st_ref[...] = moments[None]                       # (1, _STATS_ROWS, f)
    h_ref[...] = h.astype(h_ref.dtype)                # bf16 activations to HBM


def _output_layer_kernel(x_ref, s_ref, t_ref, w_ref, b_ref, o_ref):
    xn = x_ref[...].astype(jnp.float32) * s_ref[...] + t_ref[...]
    out = jnp.dot(xn.astype(jnp.bfloat16), w_ref[...],
                  preferred_element_type=jnp.float32) + b_ref[...]
    o_ref[...] = out.astype(o_ref.dtype)


def _hidden_layer_call(x, scale, shift, w, b, *, b_tile, n_tiles, n_valid,
                       mask_rows):
    kin = x.shape[1]
    f_out = w.shape[1]
    kernel = functools.partial(_hidden_layer_kernel, b_tile=b_tile,
                               n_valid=n_valid, mask_rows=mask_rows)
    return pl.pallas_call(
        kernel,
        out_shape=(
            jax.ShapeDtypeStruct((n_tiles * b_tile, f_out), jnp.bfloat16),
            jax.ShapeDtypeStruct((n_tiles, _STATS_ROWS, f_out), jnp.float32),
        ),
        grid=(n_tiles,),
        in_specs=[
            pl.BlockSpec((b_tile, kin), lambda i: (i, 0)),      # x tile
            pl.BlockSpec((1, kin), lambda i: (0, 0)),           # BN scale (resident)
            pl.BlockSpec((1, kin), lambda i: (0, 0)),           # BN shift (resident)
            pl.BlockSpec((kin, f_out), lambda i: (0, 0)),       # weight  (resident)
            pl.BlockSpec((1, f_out), lambda i: (0, 0)),         # bias    (resident)
        ],
        out_specs=(
            pl.BlockSpec((b_tile, f_out), lambda i: (i, 0)),
            pl.BlockSpec((1, _STATS_ROWS, f_out), lambda i: (i, 0, 0)),
        ),
        compiler_params=pltpu.CompilerParams(
            dimension_semantics=("parallel",),
            vmem_limit_bytes=_VMEM_LIMIT),
    )(x, scale, shift, w, b)


def _output_layer_call(x, scale, shift, w, b, *, b_tile, n_tiles, out_pad):
    kin = x.shape[1]
    return pl.pallas_call(
        _output_layer_kernel,
        out_shape=jax.ShapeDtypeStruct((n_tiles * b_tile, out_pad), jnp.float32),
        grid=(n_tiles,),
        in_specs=[
            pl.BlockSpec((b_tile, kin), lambda i: (i, 0)),
            pl.BlockSpec((1, kin), lambda i: (0, 0)),
            pl.BlockSpec((1, kin), lambda i: (0, 0)),
            pl.BlockSpec((kin, out_pad), lambda i: (0, 0)),
            pl.BlockSpec((1, out_pad), lambda i: (0, 0)),
        ],
        out_specs=pl.BlockSpec((b_tile, out_pad), lambda i: (i, 0)),
        compiler_params=pltpu.CompilerParams(
            dimension_semantics=("parallel",),
            vmem_limit_bytes=_VMEM_LIMIT),
    )(x, scale, shift, w, b)


def _bn_scale_shift(stats, gamma, beta, n):
    """Fold per-tile (sum, sumsq) partials into per-feature affine scale/shift."""
    s = jnp.sum(stats, axis=0)                  # (_STATS_ROWS, F)
    mu = s[0:1, :] / n
    var = s[1:2, :] / n - mu * mu               # biased batch variance
    scale = gamma * lax.rsqrt(var + BN_EPS)     # (1, F)
    shift = beta - mu * scale
    return scale, shift


# --------------------------------------------------------------------------
# Public wrapper.
# --------------------------------------------------------------------------
def generator_forward(x, params, *, max_batch_tile=512):
    """Generator forward pass (BatchNorm1d in PyTorch training mode)."""
    B, d_in = x.shape
    d_out = params["w3"].shape[1]

    k_pad = _round_up(d_in, _LANE)              # lane-dense layer-1 contraction
    out_pad = _round_up(d_out, _LANE)           # lane-dense output stores
    b_tile = min(_round_up(max_batch_tile, _SUBLANE), _round_up(B, _SUBLANE))
    b_pad = _round_up(B, b_tile)
    n_tiles = b_pad // b_tile
    mask_rows = b_pad != B

    # bf16 matmul operands (f32 accumulation inside the kernels), zero-padded.
    xp = jnp.zeros((b_pad, k_pad), jnp.bfloat16)
    xp = xp.at[:B, :d_in].set(x.astype(jnp.bfloat16))
    w1 = jnp.zeros((k_pad, 128), jnp.bfloat16)
    w1 = w1.at[:d_in, :].set(params["w1"].astype(jnp.bfloat16))
    w2 = params["w2"].astype(jnp.bfloat16)
    w3 = jnp.zeros((512, out_pad), jnp.bfloat16)
    w3 = w3.at[:, :d_out].set(params["w3"].astype(jnp.bfloat16))
    b3 = jnp.zeros((1, out_pad), jnp.float32)
    b3 = b3.at[:, :d_out].set(params["b3"])

    if n_tiles == 1:
        # Whole (padded) batch fits a single tile: fully fused kernel.
        vmem = pl.BlockSpec(memory_space=pltpu.MemorySpace.VMEM)
        kernel = functools.partial(_fused_kernel, n_valid=B,
                                   mask_rows=mask_rows)
        out = pl.pallas_call(
            kernel,
            out_shape=jax.ShapeDtypeStruct((b_pad, out_pad), jnp.float32),
            in_specs=[vmem] * 11,
            out_specs=vmem,
            compiler_params=pltpu.CompilerParams(vmem_limit_bytes=_VMEM_LIMIT),
        )(xp, w1, params["b1"], params["g1"], params["be1"],
          w2, params["b2"], params["g2"], params["be2"], w3, b3)
        return out[:B, :d_out]

    # Batch-tiled 3-stage pipeline with cross-tile BatchNorm statistics.
    ones_k = jnp.ones((1, k_pad), jnp.float32)
    zeros_k = jnp.zeros((1, k_pad), jnp.float32)

    h1, st1 = _hidden_layer_call(xp, ones_k, zeros_k, w1, params["b1"],
                                 b_tile=b_tile, n_tiles=n_tiles, n_valid=B,
                                 mask_rows=mask_rows)
    s1, t1 = _bn_scale_shift(st1, params["g1"], params["be1"], B)

    h2, st2 = _hidden_layer_call(h1, s1, t1, w2, params["b2"],
                                 b_tile=b_tile, n_tiles=n_tiles, n_valid=B,
                                 mask_rows=mask_rows)
    s2, t2 = _bn_scale_shift(st2, params["g2"], params["be2"], B)

    out = _output_layer_call(h2, s2, t2, w3, b3, b_tile=b_tile,
                             n_tiles=n_tiles, out_pad=out_pad)
    return out[:B, :d_out]


# --------------------------------------------------------------------------
# Parameters (weights stored (in, out) = transpose of PyTorch) and reference.
# --------------------------------------------------------------------------
def init_params(key, input_dim, output_dim):
    ks = jax.random.split(key, 6)
    return {
        "w1": jax.random.normal(ks[0], (input_dim, 128), jnp.float32) * 0.05,
        "b1": jax.random.normal(ks[1], (1, 128), jnp.float32) * 0.05,
        "g1": jnp.ones((1, 128), jnp.float32),
        "be1": jnp.zeros((1, 128), jnp.float32),
        "w2": jax.random.normal(ks[2], (128, 512), jnp.float32) * 0.05,
        "b2": jax.random.normal(ks[3], (1, 512), jnp.float32) * 0.05,
        "g2": jnp.ones((1, 512), jnp.float32),
        "be2": jnp.zeros((1, 512), jnp.float32),
        "w3": jax.random.normal(ks[4], (512, output_dim), jnp.float32) * 0.05,
        "b3": jax.random.normal(ks[5], (1, output_dim), jnp.float32) * 0.05,
    }


def _reference_forward(x, p):
    """Plain-JAX f32 reference for correctness checking."""
    def bn(h, g, b):
        mu = jnp.mean(h, axis=0, keepdims=True)
        var = jnp.mean((h - mu) ** 2, axis=0, keepdims=True)
        return (h - mu) / jnp.sqrt(var + BN_EPS) * g + b

    h = bn(_lrelu(x @ p["w1"] + p["b1"]), p["g1"], p["be1"])
    h = bn(_lrelu(h @ p["w2"] + p["b2"]), p["g2"], p["be2"])
    return h @ p["w3"] + p["b3"]


if __name__ == "__main__":
    key = jax.random.PRNGKey(0)
    k_x1, k_x2, k_p = jax.random.split(key, 3)

    INPUT_DIM, OUTPUT_DIM = 32, 64
    params = init_params(k_p, INPUT_DIM, OUTPUT_DIM)

    # Path 1: small batch -> fused single-tile kernel.
    B1 = 8
    x1 = jax.random.normal(k_x1, (B1, INPUT_DIM), jnp.float32)
    out1 = jax.block_until_ready(generator_forward(x1, params))
    ref1 = _reference_forward(x1, params)
    assert out1.shape == (B1, OUTPUT_DIM)
    assert jnp.allclose(out1, ref1, atol=8e-2, rtol=8e-2), "fused path mismatch"

    # Path 2: batch-tiled pipeline (3 tiles, padded rows masked in BN stats).
    B2 = 20
    x2 = jax.random.normal(k_x2, (B2, INPUT_DIM), jnp.float32)
    out2 = jax.block_until_ready(
        generator_forward(x2, params, max_batch_tile=8))
    ref2 = _reference_forward(x2, params)
    assert out2.shape == (B2, OUTPUT_DIM)
    assert jnp.allclose(out2, ref2, atol=8e-2, rtol=8e-2), "tiled path mismatch"

    print("KERNEL_OK")
</pallas_src>

<mosaic_0001>
module attributes {stable_mosaic.version = 11 : i64} {
  func.func @_fused_kernel(%arg0: memref<8x128xbf16, #tpu.memory_space<vmem>>, %arg1: memref<128x128xbf16, #tpu.memory_space<vmem>>, %arg2: memref<1x128xf32, #tpu.memory_space<vmem>>, %arg3: memref<1x128xf32, #tpu.memory_space<vmem>>, %arg4: memref<1x128xf32, #tpu.memory_space<vmem>>, %arg5: memref<128x512xbf16, #tpu.memory_space<vmem>>, %arg6: memref<1x512xf32, #tpu.memory_space<vmem>>, %arg7: memref<1x512xf32, #tpu.memory_space<vmem>>, %arg8: memref<1x512xf32, #tpu.memory_space<vmem>>, %arg9: memref<512x128xbf16, #tpu.memory_space<vmem>>, %arg10: memref<1x128xf32, #tpu.memory_space<vmem>>, %arg11: memref<8x128xf32, #tpu.memory_space<vmem>>) attributes {dimension_semantics = [], scalar_prefetch = 0 : i64, scratch_operands = 0 : i64, tpu.core_type = #tpu.core_type<tc>} {
    %c0 = arith.constant 0 : index
    %c0_0 = arith.constant 0 : index
    %0 = vector.load %arg0[%c0, %c0_0] : memref<8x128xbf16, #tpu.memory_space<vmem>>, vector<8x128xbf16>
    %c0_1 = arith.constant 0 : index
    %c0_2 = arith.constant 0 : index
    %1 = vector.load %arg1[%c0_1, %c0_2] : memref<128x128xbf16, #tpu.memory_space<vmem>>, vector<128x128xbf16>
    %cst = arith.constant dense<0.000000e+00> : vector<8x128xf32>
    %2 = tpu.matmul %0, %1, %cst {dimension_numbers = #tpu.dot_dimension_numbers<[1], [0], [0], [1], [0, 0, 1, 1], [], []>} : vector<8x128xbf16>, vector<128x128xbf16>, vector<8x128xf32> -> vector<8x128xf32>
    %c0_3 = arith.constant 0 : index
    %c0_4 = arith.constant 0 : index
    %3 = vector.load %arg2[%c0_3, %c0_4] : memref<1x128xf32, #tpu.memory_space<vmem>>, vector<1x128xf32>
    %4 = vector.broadcast %3 : vector<1x128xf32> to vector<8x128xf32>
    %5 = arith.addf %2, %4 : vector<8x128xf32>
    %cst_5 = arith.constant 0.000000e+00 : f32
    %6 = vector.broadcast %cst_5 : f32 to vector<8x128xf32>
    %7 = arith.cmpf ogt, %5, %6 : vector<8x128xf32>
    %cst_6 = arith.constant 2.000000e-01 : f32
    %8 = vector.broadcast %cst_6 : f32 to vector<8x128xf32>
    %9 = arith.mulf %8, %5 : vector<8x128xf32>
    %10 = arith.select %7, %5, %9 : vector<8x128xi1>, vector<8x128xf32>
    %c0_7 = arith.constant 0 : index
    %c0_8 = arith.constant 0 : index
    %11 = vector.load %arg3[%c0_7, %c0_8] : memref<1x128xf32, #tpu.memory_space<vmem>>, vector<1x128xf32>
    %c0_9 = arith.constant 0 : index
    %c0_10 = arith.constant 0 : index
    %12 = vector.load %arg4[%c0_9, %c0_10] : memref<1x128xf32, #tpu.memory_space<vmem>>, vector<1x128xf32>
    %cst_11 = arith.constant dense<0.000000e+00> : vector<128xf32>
    %13 = vector.multi_reduction <add>, %10, %cst_11 [0] : vector<8x128xf32> to vector<128xf32>
    %14 = vector.shape_cast %13 : vector<128xf32> to vector<1x128xf32>
    %cst_12 = arith.constant 8.000000e+00 : f32
    %15 = vector.broadcast %cst_12 : f32 to vector<1x128xf32>
    %16 = arith.divf %14, %15 : vector<1x128xf32>
    %17 = arith.mulf %10, %10 : vector<8x128xf32>
    %cst_13 = arith.constant dense<0.000000e+00> : vector<128xf32>
    %18 = vector.multi_reduction <add>, %17, %cst_13 [0] : vector<8x128xf32> to vector<128xf32>
    %19 = vector.shape_cast %18 : vector<128xf32> to vector<1x128xf32>
    %cst_14 = arith.constant 8.000000e+00 : f32
    %20 = vector.broadcast %cst_14 : f32 to vector<1x128xf32>
    %21 = arith.divf %19, %20 : vector<1x128xf32>
    %22 = arith.mulf %16, %16 : vector<1x128xf32>
    %23 = arith.subf %21, %22 : vector<1x128xf32>
    %cst_15 = arith.constant 9.99999974E-6 : f32
    %24 = vector.broadcast %cst_15 : f32 to vector<1x128xf32>
    %25 = arith.addf %23, %24 : vector<1x128xf32>
    %26 = math.rsqrt %25 : vector<1x128xf32>
    %27 = arith.mulf %11, %26 : vector<1x128xf32>
    %28 = vector.broadcast %27 : vector<1x128xf32> to vector<8x128xf32>
    %29 = arith.mulf %10, %28 : vector<8x128xf32>
    %30 = arith.mulf %16, %27 : vector<1x128xf32>
    %31 = arith.subf %12, %30 : vector<1x128xf32>
    %32 = vector.broadcast %31 : vector<1x128xf32> to vector<8x128xf32>
    %33 = arith.addf %29, %32 : vector<8x128xf32>
    %34 = arith.truncf %33 : vector<8x128xf32> to vector<8x128xbf16>
    %c0_16 = arith.constant 0 : index
    %c0_17 = arith.constant 0 : index
    %35 = vector.load %arg5[%c0_16, %c0_17] : memref<128x512xbf16, #tpu.memory_space<vmem>>, vector<128x512xbf16>
    %cst_18 = arith.constant dense<0.000000e+00> : vector<8x512xf32>
    %36 = tpu.matmul %34, %35, %cst_18 {dimension_numbers = #tpu.dot_dimension_numbers<[1], [0], [0], [1], [0, 0, 1, 1], [], []>} : vector<8x128xbf16>, vector<128x512xbf16>, vector<8x512xf32> -> vector<8x512xf32>
    %c0_19 = arith.constant 0 : index
    %c0_20 = arith.constant 0 : index
    %37 = vector.load %arg6[%c0_19, %c0_20] : memref<1x512xf32, #tpu.memory_space<vmem>>, vector<1x512xf32>
    %38 = vector.broadcast %37 : vector<1x512xf32> to vector<8x512xf32>
    %39 = arith.addf %36, %38 : vector<8x512xf32>
    %cst_21 = arith.constant 0.000000e+00 : f32
    %40 = vector.broadcast %cst_21 : f32 to vector<8x512xf32>
    %41 = arith.cmpf ogt, %39, %40 : vector<8x512xf32>
    %cst_22 = arith.constant 2.000000e-01 : f32
    %42 = vector.broadcast %cst_22 : f32 to vector<8x512xf32>
    %43 = arith.mulf %42, %39 : vector<8x512xf32>
    %44 = arith.select %41, %39, %43 : vector<8x512xi1>, vector<8x512xf32>
    %c0_23 = arith.constant 0 : index
    %c0_24 = arith.constant 0 : index
    %45 = vector.load %arg7[%c0_23, %c0_24] : memref<1x512xf32, #tpu.memory_space<vmem>>, vector<1x512xf32>
    %c0_25 = arith.constant 0 : index
    %c0_26 = arith.constant 0 : index
    %46 = vector.load %arg8[%c0_25, %c0_26] : memref<1x512xf32, #tpu.memory_space<vmem>>, vector<1x512xf32>
    %cst_27 = arith.constant dense<0.000000e+00> : vector<512xf32>
    %47 = vector.multi_reduction <add>, %44, %cst_27 [0] : vector<8x512xf32> to vector<512xf32>
    %48 = vector.shape_cast %47 : vector<512xf32> to vector<1x512xf32>
    %cst_28 = arith.constant 8.000000e+00 : f32
    %49 = vector.broadcast %cst_28 : f32 to vector<1x512xf32>
    %50 = arith.divf %48, %49 : vector<1x512xf32>
    %51 = arith.mulf %44, %44 : vector<8x512xf32>
    %cst_29 = arith.constant dense<0.000000e+00> : vector<512xf32>
    %52 = vector.multi_reduction <add>, %51, %cst_29 [0] : vector<8x512xf32> to vector<512xf32>
    %53 = vector.shape_cast %52 : vector<512xf32> to vector<1x512xf32>
    %cst_30 = arith.constant 8.000000e+00 : f32
    %54 = vector.broadcast %cst_30 : f32 to vector<1x512xf32>
    %55 = arith.divf %53, %54 : vector<1x512xf32>
    %56 = arith.mulf %50, %50 : vector<1x512xf32>
    %57 = arith.subf %55, %56 : vector<1x512xf32>
    %cst_31 = arith.constant 9.99999974E-6 : f32
    %58 = vector.broadcast %cst_31 : f32 to vector<1x512xf32>
    %59 = arith.addf %57, %58 : vector<1x512xf32>
    %60 = math.rsqrt %59 : vector<1x512xf32>
    %61 = arith.mulf %45, %60 : vector<1x512xf32>
    %62 = vector.broadcast %61 : vector<1x512xf32> to vector<8x512xf32>
    %63 = arith.mulf %44, %62 : vector<8x512xf32>
    %64 = arith.mulf %50, %61 : vector<1x512xf32>
    %65 = arith.subf %46, %64 : vector<1x512xf32>
    %66 = vector.broadcast %65 : vector<1x512xf32> to vector<8x512xf32>
    %67 = arith.addf %63, %66 : vector<8x512xf32>
    %68 = arith.truncf %67 : vector<8x512xf32> to vector<8x512xbf16>
    %c0_32 = arith.constant 0 : index
    %c0_33 = arith.constant 0 : index
    %69 = vector.load %arg9[%c0_32, %c0_33] : memref<512x128xbf16, #tpu.memory_space<vmem>>, vector<512x128xbf16>
    %cst_34 = arith.constant dense<0.000000e+00> : vector<8x128xf32>
    %70 = tpu.matmul %68, %69, %cst_34 {dimension_numbers = #tpu.dot_dimension_numbers<[1], [0], [0], [1], [0, 0, 1, 1], [], []>} : vector<8x512xbf16>, vector<512x128xbf16>, vector<8x128xf32> -> vector<8x128xf32>
    %c0_35 = arith.constant 0 : index
    %c0_36 = arith.constant 0 : index
    %71 = vector.load %arg10[%c0_35, %c0_36] : memref<1x128xf32, #tpu.memory_space<vmem>>, vector<1x128xf32>
    %72 = vector.broadcast %71 : vector<1x128xf32> to vector<8x128xf32>
    %73 = arith.addf %70, %72 : vector<8x128xf32>
    %c0_37 = arith.constant 0 : index
    %c0_38 = arith.constant 0 : index
    %74 = vector.load %arg11[%c0_37, %c0_38] : memref<8x128xf32, #tpu.memory_space<vmem>>, vector<8x128xf32>
    tpu.vector_store %arg11[%c0_37, %c0_38], %73 {strides = array<i32>} : memref<8x128xf32, #tpu.memory_space<vmem>>, vector<8x128xf32>,
    return
  }
}

</mosaic_0001>

<llo_original>
// kernel: tpu_custom_call.1
$region0: #{tpu_custom_call.1}
  #allocation0 [shape = 'u32[]', space=smem, size = 0x4, offset = 0x4, fixed_abs, tag = 'smem constant byte address 0x4 - core index']
  #allocation1 [shape = 'u32[144,128]{1,0:T(1,128)}', space=vmem, size = 0x12000, scoped, tag = 'internal scratch']
  %s0 = inlined_call_operand.hbm [shape: bf16[8,128], index: 0, kind: input, shape index: {}]
  %s1 = inlined_call_operand.hbm [shape: bf16[128,128], index: 1, kind: input, shape index: {}]
  %s2 = inlined_call_operand.hbm [shape: f32[1,128], index: 2, kind: input, shape index: {}]
  %s3 = inlined_call_operand.hbm [shape: f32[1,128], index: 3, kind: input, shape index: {}]
  %s4 = inlined_call_operand.hbm [shape: f32[1,128], index: 4, kind: input, shape index: {}]
  %s5 = inlined_call_operand.hbm [shape: bf16[128,512], index: 5, kind: input, shape index: {}]
  %s6 = inlined_call_operand.vmem [shape: f32[1,512], index: 6, kind: input, shape index: {}]
  %s7 = inlined_call_operand.vmem [shape: f32[1,512], index: 7, kind: input, shape index: {}]
  %s8 = inlined_call_operand.vmem [shape: f32[1,512], index: 8, kind: input, shape index: {}]
  %s9 = inlined_call_operand.hbm [shape: bf16[512,128], index: 9, kind: input, shape index: {}]
  %s10 = inlined_call_operand.vmem [shape: f32[1,128], index: 10, kind: input, shape index: {}]
  %s11 = inlined_call_operand.hbm [shape: f32[8,128], index: 11, kind: output, shape index: {}]
  %s12 = sld [smem:[#allocation0]]
  $region82: #{tpu_custom_call.1} parent=0
    _
  %s14 = ssub.s32 1, %s12
  %s15 = scalar_select 0, %s14, %s12
  $region1: #{tpu_custom_call.1} parent=0
    #allocation2 [shape = 'u8[2048]{0}', space=vmem, size = 0x800, scoped, tag = 'input window, operand 0, single buffered']
    #allocation3 [shape = 's32[1]{0}', space=sflag, size = 0x4, scoped, tag = 'scoped memory for tpu_custom_call.1']
    #allocation4 [shape = 's32[1]{0}', space=sflag, size = 0x4, scoped, tag = 'scoped memory for tpu_custom_call.1']
    #allocation5 [shape = 'u8[32768]{0}', space=vmem, size = 0x8000, scoped, tag = 'input window, operand 1, single buffered']
    #allocation6 [shape = 's32[1]{0}', space=sflag, size = 0x4, scoped, tag = 'scoped memory for tpu_custom_call.1']
    #allocation7 [shape = 'u8[512]{0}', space=vmem, size = 0x400, scoped, tag = 'input window, operand 2, single buffered']
    #allocation8 [shape = 'u8[512]{0}', space=vmem, size = 0x400, scoped, tag = 'input window, operand 3, single buffered']
    #allocation9 [shape = 's32[1]{0}', space=sflag, size = 0x4, scoped, tag = 'scoped memory for tpu_custom_call.1']
    #allocation10 [shape = 'u8[512]{0}', space=vmem, size = 0x400, scoped, tag = 'input window, operand 4, single buffered']
    #allocation11 [shape = 'u8[131072]{0}', space=vmem, size = 0x20000, scoped, tag = 'input window, operand 5, single buffered']
    #allocation12 [shape = 's32[1]{0}', space=sflag, size = 0x4, scoped, tag = 'scoped memory for tpu_custom_call.1']
    #allocation13 [shape = 'u8[131072]{0}', space=vmem, size = 0x20000, scoped, tag = 'input window, operand 9, single buffered']
    #allocation14 [shape = 'u8[4096]{0}', space=vmem, size = 0x1000, scoped, tag = 'output window, operand 0, single buffered']
    %16 = vsyncpa [#allocation3], 0
    %17 = vsyncpa [#allocation6], 0
    %18 = vsyncpa [#allocation9], 0
    %19 = vsyncpa [#allocation12], 0
    %20 = vsyncpa [#allocation4], 0
    // Predicated region
    $region2: #{tpu_custom_call.1} parent=1 // pred_check
      _
    $region3: #{tpu_custom_call.1} parent=1 // pred_check_branch
      %22 = sbr.rel (0) target = $region5
    $region4: #{tpu_custom_call.1} parent=1 // pred_region
      %s24 = ssub.s32 64, 64
      %25 = vsyncadd [#allocation3], %s24
      %s27 = sshll.u32 [#allocation2], 4
      %s28 = int_to_ptr.vmem [resolvable:$true] %s27
      %30 = dma.hbm_to_vmem [thread:$0]  %s0, 64, %s28, [#allocation3]
    $region5: #{tpu_custom_call.1} parent=1 // pred_fallthru
      _
    // Predicated region
    $region6: #{tpu_custom_call.1} parent=1 // pred_check
      _
    $region7: #{tpu_custom_call.1} parent=1 // pred_check_branch
      %32 = sbr.rel (0) target = $region9
    $region8: #{tpu_custom_call.1} parent=1 // pred_region
      %s34 = ssub.s32 1024, 1024
      %35 = vsyncadd [#allocation6], %s34
      %s36 = sshll.u32 [#allocation5], 4
      %s37 = int_to_ptr.vmem [resolvable:$true] %s36
      %42 = dma.hbm_to_vmem [thread:$0]  %s1, 1024, %s37, [#allocation6], 64, 64, 4
    $region9: #{tpu_custom_call.1} parent=1 // pred_fallthru
      _
    // Predicated region
    $region10: #{tpu_custom_call.1} parent=1 // pred_check
      _
    $region11: #{tpu_custom_call.1} parent=1 // pred_check_branch
      %44 = sbr.rel (0) target = $region13
    $region12: #{tpu_custom_call.1} parent=1 // pred_region
      %s46 = ssub.s32 16, 16
      %47 = vsyncadd [#allocation6], %s46
      %s49 = sshll.u32 [#allocation7], 4
      %s50 = int_to_ptr.vmem [resolvable:$true] %s49
      %52 = dma.hbm_to_vmem [thread:$0]  %s2, 16, %s50, [#allocation6]
    $region13: #{tpu_custom_call.1} parent=1 // pred_fallthru
      _
    // Predicated region
    $region14: #{tpu_custom_call.1} parent=1 // pred_check
      _
    $region15: #{tpu_custom_call.1} parent=1 // pred_check_branch
      %54 = sbr.rel (0) target = $region17
    $region16: #{tpu_custom_call.1} parent=1 // pred_region
      %s56 = ssub.s32 16, 16
      %57 = vsyncadd [#allocation9], %s56
      %s59 = sshll.u32 [#allocation8], 4
      %s60 = int_to_ptr.vmem [resolvable:$true] %s59
      %62 = dma.hbm_to_vmem [thread:$0]  %s3, 16, %s60, [#allocation9]
    $region17: #{tpu_custom_call.1} parent=1 // pred_fallthru
      _
    // Predicated region
    $region18: #{tpu_custom_call.1} parent=1 // pred_check
      _
    $region19: #{tpu_custom_call.1} parent=1 // pred_check_branch
      %64 = sbr.rel (0) target = $region21
    $region20: #{tpu_custom_call.1} parent=1 // pred_region
      %s66 = ssub.s32 16, 16
      %67 = vsyncadd [#allocation9], %s66
      %s69 = sshll.u32 [#allocation10], 4
      %s70 = int_to_ptr.vmem [resolvable:$true] %s69
      %72 = dma.hbm_to_vmem [thread:$0]  %s4, 16, %s70, [#allocation9]
    $region21: #{tpu_custom_call.1} parent=1 // pred_fallthru
      _
    // Predicated region
    $region22: #{tpu_custom_call.1} parent=1 // pred_check
      _
    $region23: #{tpu_custom_call.1} parent=1 // pred_check_branch
      %74 = sbr.rel (0) target = $region25
    $region24: #{tpu_custom_call.1} parent=1 // pred_region
      %s76 = ssub.s32 4096, 4096
      %77 = vsyncadd [#allocation12], %s76
      %s78 = sshll.u32 [#allocation11], 4
      %s79 = int_to_ptr.vmem [resolvable:$true] %s78
      %84 = dma.hbm_to_vmem [thread:$0]  %s5, 4096, %s79, [#allocation12], 256, 256, 16
    $region25: #{tpu_custom_call.1} parent=1 // pred_fallthru
      _
    // Predicated region
    $region26: #{tpu_custom_call.1} parent=1 // pred_check
      _
    $region27: #{tpu_custom_call.1} parent=1 // pred_check_branch
      %86 = sbr.rel (0) target = $region29
    $region28: #{tpu_custom_call.1} parent=1 // pred_region
      _
    $region29: #{tpu_custom_call.1} parent=1 // pred_fallthru
      _
    // Predicated region
    $region30: #{tpu_custom_call.1} parent=1 // pred_check
      _
    $region31: #{tpu_custom_call.1} parent=1 // pred_check_branch
      %88 = sbr.rel (0) target = $region33
    $region32: #{tpu_custom_call.1} parent=1 // pred_region
      _
    $region33: #{tpu_custom_call.1} parent=1 // pred_fallthru
      _
    // Predicated region
    $region34: #{tpu_custom_call.1} parent=1 // pred_check
      _
    $region35: #{tpu_custom_call.1} parent=1 // pred_check_branch
      %90 = sbr.rel (0) target = $region37
    $region36: #{tpu_custom_call.1} parent=1 // pred_region
      _
    $region37: #{tpu_custom_call.1} parent=1 // pred_fallthru
      _
    // Predicated region
    $region38: #{tpu_custom_call.1} parent=1 // pred_check
      _
    $region39: #{tpu_custom_call.1} parent=1 // pred_check_branch
      %92 = sbr.rel (0) target = $region41
    $region40: #{tpu_custom_call.1} parent=1 // pred_region
      %s94 = ssub.s32 4096, 4096
      %95 = vsyncadd [#allocation12], %s94
      %s96 = sshll.u32 [#allocation13], 4
      %s97 = int_to_ptr.vmem [resolvable:$true] %s96
      %102 = dma.hbm_to_vmem [thread:$0]  %s9, 4096, %s97, [#allocation12], 64, 64, 4
    $region41: #{tpu_custom_call.1} parent=1 // pred_fallthru
      _
    // Predicated region
    $region42: #{tpu_custom_call.1} parent=1 // pred_check
      _
    $region43: #{tpu_custom_call.1} parent=1 // pred_check_branch
      %104 = sbr.rel (0) target = $region45
    $region44: #{tpu_custom_call.1} parent=1 // pred_region
      _
    $region45: #{tpu_custom_call.1} parent=1 // pred_fallthru
      _
    // Predicated region
    $region46: #{tpu_custom_call.1} parent=1 // pred_check
      _
    $region47: #{tpu_custom_call.1} parent=1 // pred_check_branch
      %106 = sbr.rel (0) target = $region49
    $region48: #{tpu_custom_call.1} parent=1 // pred_region
      %107 = dma.done [#allocation3], 64
    $region49: #{tpu_custom_call.1} parent=1 // pred_fallthru
      _
    // Predicated region
    $region50: #{tpu_custom_call.1} parent=1 // pred_check
      _
    $region51: #{tpu_custom_call.1} parent=1 // pred_check_branch
      %109 = sbr.rel (0) target = $region53
    $region52: #{tpu_custom_call.1} parent=1 // pred_region
      %110 = dma.done [#allocation6], 1024
    $region53: #{tpu_custom_call.1} parent=1 // pred_fallthru
      _
    // Predicated region
    $region54: #{tpu_custom_call.1} parent=1 // pred_check
      _
    $region55: #{tpu_custom_call.1} parent=1 // pred_check_branch
      %112 = sbr.rel (0) target = $region57
    $region56: #{tpu_custom_call.1} parent=1 // pred_region
      %113 = dma.done [#allocation6], 16
    $region57: #{tpu_custom_call.1} parent=1 // pred_fallthru
      _
    // Predicated region
    $region58: #{tpu_custom_call.1} parent=1 // pred_check
      _
    $region59: #{tpu_custom_call.1} parent=1 // pred_check_branch
      %115 = sbr.rel (0) target = $region61
    $region60: #{tpu_custom_call.1} parent=1 // pred_region
      %116 = dma.done [#allocation9], 16
    $region61: #{tpu_custom_call.1} parent=1 // pred_fallthru
      _
    // Predicated region
    $region62: #{tpu_custom_call.1} parent=1 // pred_check
      _
    $region63: #{tpu_custom_call.1} parent=1 // pred_check_branch
      %118 = sbr.rel (0) target = $region65
    $region64: #{tpu_custom_call.1} parent=1 // pred_region
      %119 = dma.done [#allocation9], 16
    $region65: #{tpu_custom_call.1} parent=1 // pred_fallthru
      _
    // Predicated region
    $region66: #{tpu_custom_call.1} parent=1 // pred_check
      _
    $region67: #{tpu_custom_call.1} parent=1 // pred_check_branch
      %121 = sbr.rel (0) target = $region69
    $region68: #{tpu_custom_call.1} parent=1 // pred_region
      %122 = dma.done [#allocation12], 4096
    $region69: #{tpu_custom_call.1} parent=1 // pred_fallthru
      _
    // Predicated region
    $region70: #{tpu_custom_call.1} parent=1 // pred_check
      _
    $region71: #{tpu_custom_call.1} parent=1 // pred_check_branch
      %124 = sbr.rel (0) target = $region73
    $region72: #{tpu_custom_call.1} parent=1 // pred_region
      %125 = dma.done [#allocation12], 4096
    $region73: #{tpu_custom_call.1} parent=1 // pred_fallthru
      _
    %v127 = vld [vmem:[#allocation2] sm:$0xf]
    %v128 = vld [vmem:[#allocation5] sm:$0xf]
    %v129 = vld [vmem:[#allocation5 + $0x4] sm:$0xf]
    %v130 = vld [vmem:[#allocation5 + $0x8] sm:$0xf]
    %v131 = vld [vmem:[#allocation5 + $0xc] sm:$0xf]
    %v132 = vld [vmem:[#allocation5 + $0x10] sm:$0xf]
    %v133 = vld [vmem:[#allocation5 + $0x14] sm:$0xf]
    %v134 = vld [vmem:[#allocation5 + $0x18] sm:$0xf]
    %v135 = vld [vmem:[#allocation5 + $0x1c] sm:$0xf]
    %v136 = vld [vmem:[#allocation5 + $0x20] sm:$0xf]
    %v137 = vld [vmem:[#allocation5 + $0x24] sm:$0xf]
    %v138 = vld [vmem:[#allocation5 + $0x28] sm:$0xf]
    %v139 = vld [vmem:[#allocation5 + $0x2c] sm:$0xf]
    %v140 = vld [vmem:[#allocation5 + $0x30] sm:$0xf]
    %v141 = vld [vmem:[#allocation5 + $0x34] sm:$0xf]
    %v142 = vld [vmem:[#allocation5 + $0x38] sm:$0xf]
    %v143 = vld [vmem:[#allocation5 + $0x3c] sm:$0xf]
    %v144 = vld [vmem:[#allocation7] sm:$0x1]
    %v146 = vlaneseq
    %v147 = vshrl.u32 %v146, 7
    %v148 = vsub.s32 0, %v147
    %v149 = vrot.slane %v144, %v148
    %v167 = vunpack.c.l.b16 %v128
    %v168 = vunpack.c.l.b16 %v129
    %v169 = vunpack.c.l.b16 %v130
    %v170 = vunpack.c.l.b16 %v131
    %v171 = vunpack.c.l.b16 %v132
    %v172 = vunpack.c.l.b16 %v133
    %v173 = vunpack.c.l.b16 %v134
    %v174 = vunpack.c.l.b16 %v135
    %v175 = vunpack.c.l.b16 %v136
    %v176 = vunpack.c.l.b16 %v137
    %v177 = vunpack.c.l.b16 %v138
    %v178 = vunpack.c.l.b16 %v139
    %v179 = vunpack.c.l.b16 %v140
    %v180 = vunpack.c.l.b16 %v141
    %v181 = vunpack.c.l.b16 %v142
    %v182 = vunpack.c.l.b16 %v143
    %v183 = vpack.c.b16 %v168, %v167
    %v184 = vpack.c.b16 %v170, %v169
    %v185 = vpack.c.b16 %v172, %v171
    %v186 = vpack.c.b16 %v174, %v173
    %v187 = vpack.c.b16 %v176, %v175
    %v188 = vpack.c.b16 %v178, %v177
    %v189 = vpack.c.b16 %v180, %v179
    %v190 = vpack.c.b16 %v182, %v181
    %199 = vmatprep.subr.bf16.mxu0 0
    %200 = vmatpush1.bf16.msra.mxu0 %v190
    %201 = vmatprep.subr.bf16.mxu0 0
    %202 = vmatpush1.bf16.msra.mxu0 %v189
    %203 = vmatprep.subr.bf16.mxu0 0
    %204 = vmatpush1.bf16.msra.mxu0 %v188
    %205 = vmatprep.subr.bf16.mxu0 0
    %206 = vmatpush1.bf16.msra.mxu0 %v187
    %207 = vmatprep.subr.bf16.mxu0 0
    %208 = vmatpush1.bf16.msra.mxu0 %v186
    %209 = vmatprep.subr.bf16.mxu0 0
    %210 = vmatpush1.bf16.msra.mxu0 %v185
    %211 = vmatprep.subr.bf16.mxu0 0
    %212 = vmatpush1.bf16.msra.mxu0 %v184
    %213 = vmatprep.subr.bf16.mxu0 0
    %214 = vmatpush1.bf16.msra.mxu0 %v183
    %215 = vmatprep.subr.bf16.mxu0 0
    %216 = vmatpush2.bf16.msra.mxu0 0
    %217 = vmatprep.subr.bf16.mxu0 0
    %218 = vmatpush2.bf16.msra.mxu0 0
    %219 = vmatprep.subr.bf16.mxu0 0
    %220 = vmatpush2.bf16.msra.mxu0 0
    %221 = vmatprep.subr.bf16.mxu0 0
    %222 = vmatpush2.bf16.msra.mxu0 0
    %223 = vmatprep.subr.bf16.mxu0 0
    %224 = vmatpush2.bf16.msra.mxu0 0
    %225 = vmatprep.subr.bf16.mxu0 0
    %226 = vmatpush2.bf16.msra.mxu0 0
    %227 = vmatprep.subr.bf16.mxu0 0
    %228 = vmatpush2.bf16.msra.mxu0 0
    %229 = vmatprep.subr.bf16.mxu0 0
    %230 = vmatpush2.bf16.msra.mxu0 0
    %231 = vmatprep.mubr.bf16.mxu0 0
    %232 = vmatmul.mubr.bf16.gmra.mxu0 %v127
    %v233 = vpop.f32.mrf.mxu0
    %v234 = vadd.f32 %v149, %v233
    %v235 = vpop.f32.mrf.mxu0
    %v236 = vpop.f32.mrf.mxu0
    %v237 = vpop.f32.mrf.mxu0
    %238 = vdwg.mxu0
    %vm239 = vcmp.gt.f32.partialorder %v234, 0.0
    %v240 = vmul.f32 %v234, 0.2
    %v241 = vsel %vm239, %v234, %v240
    %v242 = vld [vmem:[#allocation8] sm:$0x1]
    %v243 = vld [vmem:[#allocation10] sm:$0x1]
    %v244 = vrot.slane %v241, 4
    %v245 = vadd.f32 %v241, %v244
    %v246 = vrot.slane %v245, 2
    %v247 = vadd.f32 %v245, %v246
    %v248 = vrot.slane %v247, 1
    %v249 = vadd.f32 %v247, %v248
    %v250 = vrcp.pop 8.0
    %v251 = vmul.f32 %v249, %v250
    %v252 = vmul.f32 %v241, %v241
    %v253 = vrot.slane %v252, 4
    %v254 = vadd.f32 %v252, %v253
    %v255 = vrot.slane %v254, 2
    %v256 = vadd.f32 %v254, %v255
    %v257 = vrot.slane %v256, 1
    %v258 = vadd.f32 %v256, %v257
    %v259 = vmul.f32 %v258, %v250
    %v260 = vmul.f32 %v251, %v251
    %v261 = vsub.f32 %v259, %v260
    %v262 = vadd.f32 %v261, 1e-05
    %v263 = vrsqrt.pop %v262
    %v264 = vmul.f32 %v242, %v263
    %v266 = vlaneseq
    %v267 = vshrl.u32 %v266, 7
    %v268 = vsub.s32 0, %v267
    %v269 = vrot.slane %v264, %v268
    %v271 = vmul.f32 %v241, %v269
    %v272 = vmul.f32 %v251, %v264
    %v273 = vsub.f32 %v243, %v272
    %v275 = vlaneseq
    %v276 = vshrl.u32 %v275, 7
    %v277 = vsub.s32 0, %v276
    %v278 = vrot.slane %v273, %v277
    %v280 = vadd.f32 %v271, %v278
    %v281 = vpack.c.bf16 %v280, %v280
    %v282 = vld [vmem:[#allocation11] sm:$0xff]
    %v283 = vld [vmem:[#allocation11 + $0x8] sm:$0xff]
    %v284 = vld [vmem:[#allocation11 + $0x10] sm:$0xff]
    %v285 = vld [vmem:[#allocation11 + $0x18] sm:$0xff]
    %v286 = vld [vmem:[#allocation11 + $0x20] sm:$0xff]
    %v287 = vld [vmem:[#allocation11 + $0x28] sm:$0xff]
    %v288 = vld [vmem:[#allocation11 + $0x30] sm:$0xff]
    %v289 = vld [vmem:[#allocation11 + $0x38] sm:$0xff]
    %v290 = vld [vmem:[#allocation11 + $0x40] sm:$0xff]
    %v291 = vld [vmem:[#allocation11 + $0x48] sm:$0xff]
    %v292 = vld [vmem:[#allocation11 + $0x50] sm:$0xff]
    %v293 = vld [vmem:[#allocation11 + $0x58] sm:$0xff]
    %v294 = vld [vmem:[#allocation11 + $0x60] sm:$0xff]
    %v295 = vld [vmem:[#allocation11 + $0x68] sm:$0xff]
    %v296 = vld [vmem:[#allocation11 + $0x70] sm:$0xff]
    %v297 = vld [vmem:[#allocation11 + $0x78] sm:$0xff]
    %v298 = vld [vmem:[#allocation11 + $0x80] sm:$0xff]
    %v299 = vld [vmem:[#allocation11 + $0x88] sm:$0xff]
    %v300 = vld [vmem:[#allocation11 + $0x90] sm:$0xff]
    %v301 = vld [vmem:[#allocation11 + $0x98] sm:$0xff]
    %v302 = vld [vmem:[#allocation11 + $0xa0] sm:$0xff]
    %v303 = vld [vmem:[#allocation11 + $0xa8] sm:$0xff]
    %v304 = vld [vmem:[#allocation11 + $0xb0] sm:$0xff]
    %v305 = vld [vmem:[#allocation11 + $0xb8] sm:$0xff]
    %v306 = vld [vmem:[#allocation11 + $0xc0] sm:$0xff]
    %v307 = vld [vmem:[#allocation11 + $0xc8] sm:$0xff]
    %v308 = vld [vmem:[#allocation11 + $0xd0] sm:$0xff]
    %v309 = vld [vmem:[#allocation11 + $0xd8] sm:$0xff]
    %v310 = vld [vmem:[#allocation11 + $0xe0] sm:$0xff]
    %v311 = vld [vmem:[#allocation11 + $0xe8] sm:$0xff]
    %v312 = vld [vmem:[#allocation11 + $0xf0] sm:$0xff]
    %v313 = vld [vmem:[#allocation11 + $0xf8] sm:$0xff]
    %v314 = vld [vmem:[%s6] sm:$0xf]
    %v316 = vlaneseq
    %v317 = vshrl.u32 %v316, 7
    %v318 = vsub.s32 0, %v317
    %v319 = vrot.slane %v314, %v318
    %v320 = vlaneseq
    %v321 = vshrl.u32 %v320, 7
    %v322 = vsub.s32 1, %v321
    %v323 = vrot.slane %v314, %v322
    %v324 = vlaneseq
    %v325 = vshrl.u32 %v324, 7
    %v326 = vsub.s32 2, %v325
    %v327 = vrot.slane %v314, %v326
    %v328 = vlaneseq
    %v329 = vshrl.u32 %v328, 7
    %v330 = vsub.s32 3, %v329
    %v331 = vrot.slane %v314, %v330
    %v368 = vunpack.c.l.b16 %v282
    %v369 = vunpack.c.h.b16 %v282
    %v370 = vunpack.c.l.b16 %v283
    %v371 = vunpack.c.h.b16 %v283
    %v372 = vunpack.c.l.b16 %v284
    %v373 = vunpack.c.h.b16 %v284
    %v374 = vunpack.c.l.b16 %v285
    %v375 = vunpack.c.h.b16 %v285
    %v376 = vunpack.c.l.b16 %v286
    %v377 = vunpack.c.h.b16 %v286
    %v378 = vunpack.c.l.b16 %v287
    %v379 = vunpack.c.h.b16 %v287
    %v380 = vunpack.c.l.b16 %v288
    %v381 = vunpack.c.h.b16 %v288
    %v382 = vunpack.c.l.b16 %v289
    %v383 = vunpack.c.h.b16 %v289
    %v384 = vunpack.c.l.b16 %v290
    %v385 = vunpack.c.h.b16 %v290
    %v386 = vunpack.c.l.b16 %v291
    %v387 = vunpack.c.h.b16 %v291
    %v388 = vunpack.c.l.b16 %v292
    %v389 = vunpack.c.h.b16 %v292
    %v390 = vunpack.c.l.b16 %v293
    %v391 = vunpack.c.h.b16 %v293
    %v392 = vunpack.c.l.b16 %v294
    %v393 = vunpack.c.h.b16 %v294
    %v394 = vunpack.c.l.b16 %v295
    %v395 = vunpack.c.h.b16 %v295
    %v396 = vunpack.c.l.b16 %v296
    %v397 = vunpack.c.h.b16 %v296
    %v398 = vunpack.c.l.b16 %v297
    %v399 = vunpack.c.h.b16 %v297
    %v400 = vunpack.c.l.b16 %v298
    %v401 = vunpack.c.h.b16 %v298
    %v402 = vunpack.c.l.b16 %v299
    %v403 = vunpack.c.h.b16 %v299
    %v404 = vunpack.c.l.b16 %v300
    %v405 = vunpack.c.h.b16 %v300
    %v406 = vunpack.c.l.b16 %v301
    %v407 = vunpack.c.h.b16 %v301
    %v408 = vunpack.c.l.b16 %v302
    %v409 = vunpack.c.h.b16 %v302
    %v410 = vunpack.c.l.b16 %v303
    %v411 = vunpack.c.h.b16 %v303
    %v412 = vunpack.c.l.b16 %v304
    %v413 = vunpack.c.h.b16 %v304
    %v414 = vunpack.c.l.b16 %v305
    %v415 = vunpack.c.h.b16 %v305
    %v416 = vunpack.c.l.b16 %v306
    %v417 = vunpack.c.h.b16 %v306
    %v418 = vunpack.c.l.b16 %v307
    %v419 = vunpack.c.h.b16 %v307
    %v420 = vunpack.c.l.b16 %v308
    %v421 = vunpack.c.h.b16 %v308
    %v422 = vunpack.c.l.b16 %v309
    %v423 = vunpack.c.h.b16 %v309
    %v424 = vunpack.c.l.b16 %v310
    %v425 = vunpack.c.h.b16 %v310
    %v426 = vunpack.c.l.b16 %v311
    %v427 = vunpack.c.h.b16 %v311
    %v428 = vunpack.c.l.b16 %v312
    %v429 = vunpack.c.h.b16 %v312
    %v430 = vunpack.c.l.b16 %v313
    %v431 = vunpack.c.h.b16 %v313
    %v432 = vpack.c.b16 %v372, %v368
    %v433 = vpack.c.b16 %v373, %v369
    %v434 = vpack.c.b16 %v374, %v370
    %v435 = vpack.c.b16 %v375, %v371
    %v436 = vpack.c.b16 %v380, %v376
    %v437 = vpack.c.b16 %v381, %v377
    %v438 = vpack.c.b16 %v382, %v378
    %v439 = vpack.c.b16 %v383, %v379
    %v440 = vpack.c.b16 %v388, %v384
    %v441 = vpack.c.b16 %v389, %v385
    %v442 = vpack.c.b16 %v390, %v386
    %v443 = vpack.c.b16 %v391, %v387
    %v444 = vpack.c.b16 %v396, %v392
    %v445 = vpack.c.b16 %v397, %v393
    %v446 = vpack.c.b16 %v398, %v394
    %v447 = vpack.c.b16 %v399, %v395
    %v448 = vpack.c.b16 %v404, %v400
    %v449 = vpack.c.b16 %v405, %v401
    %v450 = vpack.c.b16 %v406, %v402
    %v451 = vpack.c.b16 %v407, %v403
    %v452 = vpack.c.b16 %v412, %v408
    %v453 = vpack.c.b16 %v413, %v409
    %v454 = vpack.c.b16 %v414, %v410
    %v455 = vpack.c.b16 %v415, %v411
    %v456 = vpack.c.b16 %v420, %v416
    %v457 = vpack.c.b16 %v421, %v417
    %v458 = vpack.c.b16 %v422, %v418
    %v459 = vpack.c.b16 %v423, %v419
    %v460 = vpack.c.b16 %v428, %v424
    %v461 = vpack.c.b16 %v429, %v425
    %v462 = vpack.c.b16 %v430, %v426
    %v463 = vpack.c.b16 %v431, %v427
    %496 = vmatprep.subr.bf16.mxu0 %v461
    %497 = vmatpush1.bf16.msra.mxu0 %v460
    %498 = vmatprep.subr.bf16.mxu0 %v457
    %499 = vmatpush1.bf16.msra.mxu0 %v456
    %500 = vmatprep.subr.bf16.mxu0 %v453
    %501 = vmatpush1.bf16.msra.mxu0 %v452
    %502 = vmatprep.subr.bf16.mxu0 %v449
    %503 = vmatpush1.bf16.msra.mxu0 %v448
    %504 = vmatprep.subr.bf16.mxu0 %v445
    %505 = vmatpush1.bf16.msra.mxu0 %v444
    %506 = vmatprep.subr.bf16.mxu0 %v441
    %507 = vmatpush1.bf16.msra.mxu0 %v440
    %508 = vmatprep.subr.bf16.mxu0 %v437
    %509 = vmatpush1.bf16.msra.mxu0 %v436
    %510 = vmatprep.subr.bf16.mxu0 %v433
    %511 = vmatpush1.bf16.msra.mxu0 %v432
    %512 = vmatprep.subr.bf16.mxu0 0
    %513 = vmatpush2.bf16.msra.mxu0 0
    %514 = vmatprep.subr.bf16.mxu0 0
    %515 = vmatpush2.bf16.msra.mxu0 0
    %516 = vmatprep.subr.bf16.mxu0 0
    %517 = vmatpush2.bf16.msra.mxu0 0
    %518 = vmatprep.subr.bf16.mxu0 0
    %519 = vmatpush2.bf16.msra.mxu0 0
    %520 = vmatprep.subr.bf16.mxu0 0
    %521 = vmatpush2.bf16.msra.mxu0 0
    %522 = vmatprep.subr.bf16.mxu0 0
    %523 = vmatpush2.bf16.msra.mxu0 0
    %524 = vmatprep.subr.bf16.mxu0 0
    %525 = vmatpush2.bf16.msra.mxu0 0
    %526 = vmatprep.subr.bf16.mxu0 0
    %527 = vmatpush2.bf16.msra.mxu0 0
    %528 = vmatprep.mubr.bf16.mxu0 0
    %529 = vmatmul.mubr.bf16.gmra.mxu0 %v281
    %v530 = vpop.f32.mrf.mxu0
    %v531 = vadd.f32 %v319, %v530
    %v532 = vpop.f32.mrf.mxu0
    %v533 = vadd.f32 %v323, %v532
    %v534 = vpop.f32.mrf.mxu0
    %v535 = vpop.f32.mrf.mxu0
    %536 = vdwg.mxu0
    %537 = vmatprep.subr.bf16.mxu0 %v463
    %538 = vmatpush1.bf16.msra.mxu0 %v462
    %539 = vmatprep.subr.bf16.mxu0 %v459
    %540 = vmatpush1.bf16.msra.mxu0 %v458
    %541 = vmatprep.subr.bf16.mxu0 %v455
    %542 = vmatpush1.bf16.msra.mxu0 %v454
    %543 = vmatprep.subr.bf16.mxu0 %v451
    %544 = vmatpush1.bf16.msra.mxu0 %v450
    %545 = vmatprep.subr.bf16.mxu0 %v447
    %546 = vmatpush1.bf16.msra.mxu0 %v446
    %547 = vmatprep.subr.bf16.mxu0 %v443
    %548 = vmatpush1.bf16.msra.mxu0 %v442
    %549 = vmatprep.subr.bf16.mxu0 %v439
    %550 = vmatpush1.bf16.msra.mxu0 %v438
    %551 = vmatprep.subr.bf16.mxu0 %v435
    %552 = vmatpush1.bf16.msra.mxu0 %v434
    %553 = vmatprep.subr.bf16.mxu0 0
    %554 = vmatpush2.bf16.msra.mxu0 0
    %555 = vmatprep.subr.bf16.mxu0 0
    %556 = vmatpush2.bf16.msra.mxu0 0
    %557 = vmatprep.subr.bf16.mxu0 0
    %558 = vmatpush2.bf16.msra.mxu0 0
    %559 = vmatprep.subr.bf16.mxu0 0
    %560 = vmatpush2.bf16.msra.mxu0 0
    %561 = vmatprep.subr.bf16.mxu0 0
    %562 = vmatpush2.bf16.msra.mxu0 0
    %563 = vmatprep.subr.bf16.mxu0 0
    %564 = vmatpush2.bf16.msra.mxu0 0
    %565 = vmatprep.subr.bf16.mxu0 0
    %566 = vmatpush2.bf16.msra.mxu0 0
    %567 = vmatprep.subr.bf16.mxu0 0
    %568 = vmatpush2.bf16.msra.mxu0 0
    %569 = vmatprep.mubr.bf16.mxu0 0
    %570 = vmatmul.mubr.bf16.gmra.mxu0 %v281
    %v571 = vpop.f32.mrf.mxu0
    %v572 = vadd.f32 %v327, %v571
    %v573 = vpop.f32.mrf.mxu0
    %v574 = vadd.f32 %v331, %v573
    %v575 = vpop.f32.mrf.mxu0
    %v576 = vpop.f32.mrf.mxu0
    %577 = vdwg.mxu0
    %vm578 = vcmp.gt.f32.partialorder %v531, 0.0
    %vm579 = vcmp.gt.f32.partialorder %v533, 0.0
    %vm580 = vcmp.gt.f32.partialorder %v572, 0.0
    %vm581 = vcmp.gt.f32.partialorder %v574, 0.0
    %v582 = vmul.f32 %v531, 0.2
    %v583 = vmul.f32 %v533, 0.2
    %v584 = vmul.f32 %v572, 0.2
    %v585 = vmul.f32 %v574, 0.2
    %v586 = vsel %vm578, %v531, %v582
    %v587 = vsel %vm579, %v533, %v583
    %v588 = vsel %vm580, %v572, %v584
    %v589 = vsel %vm581, %v574, %v585
    %v590 = vld [vmem:[%s7] sm:$0xf]
    %v591 = vld [vmem:[%s8] sm:$0xf]
    %v592 = vrot.slane %v586, 4
    %v593 = vadd.f32 %v586, %v592
    %v594 = vrot.slane %v593, 2
    %v595 = vadd.f32 %v593, %v594
    %v596 = vrot.slane %v595, 1
    %v597 = vadd.f32 %v595, %v596
    %v598 = vrot.slane %v587, 4
    %v599 = vadd.f32 %v587, %v598
    %v600 = vrot.slane %v599, 2
    %v601 = vadd.f32 %v599, %v600
    %v602 = vrot.slane %v601, 1
    %v603 = vadd.f32 %v601, %v602
    %v604 = vrot.slane %v588, 4
    %v605 = vadd.f32 %v588, %v604
    %v606 = vrot.slane %v605, 2
    %v607 = vadd.f32 %v605, %v606
    %v608 = vrot.slane %v607, 1
    %v609 = vadd.f32 %v607, %v608
    %v610 = vrot.slane %v589, 4
    %v611 = vadd.f32 %v589, %v610
    %v612 = vrot.slane %v611, 2
    %v613 = vadd.f32 %v611, %v612
    %v614 = vrot.slane %v613, 1
    %v615 = vadd.f32 %v613, %v614
    %v616 = vmul.f32 %v597, %v250
    %v617 = vmul.f32 %v603, %v250
    %v618 = vmul.f32 %v609, %v250
    %v619 = vmul.f32 %v615, %v250
    %v620 = vmul.f32 %v586, %v586
    %v621 = vmul.f32 %v587, %v587
    %v622 = vmul.f32 %v588, %v588
    %v623 = vmul.f32 %v589, %v589
    %v624 = vrot.slane %v620, 4
    %v625 = vadd.f32 %v620, %v624
    %v626 = vrot.slane %v625, 2
    %v627 = vadd.f32 %v625, %v626
    %v628 = vrot.slane %v627, 1
    %v629 = vadd.f32 %v627, %v628
    %v630 = vrot.slane %v621, 4
    %v631 = vadd.f32 %v621, %v630
    %v632 = vrot.slane %v631, 2
    %v633 = vadd.f32 %v631, %v632
    %v634 = vrot.slane %v633, 1
    %v635 = vadd.f32 %v633, %v634
    %v636 = vrot.slane %v622, 4
    %v637 = vadd.f32 %v622, %v636
    %v638 = vrot.slane %v637, 2
    %v639 = vadd.f32 %v637, %v638
    %v640 = vrot.slane %v639, 1
    %v641 = vadd.f32 %v639, %v640
    %v642 = vrot.slane %v623, 4
    %v643 = vadd.f32 %v623, %v642
    %v644 = vrot.slane %v643, 2
    %v645 = vadd.f32 %v643, %v644
    %v646 = vrot.slane %v645, 1
    %v647 = vadd.f32 %v645, %v646
    %v648 = vmul.f32 %v629, %v250
    %v649 = vmul.f32 %v635, %v250
    %v650 = vmul.f32 %v641, %v250
    %v651 = vmul.f32 %v647, %v250
    %v652 = vmul.f32 %v616, %v616
    %v653 = vmul.f32 %v617, %v617
    %v654 = vmul.f32 %v618, %v618
    %v655 = vmul.f32 %v619, %v619
    %v656 = vsub.f32 %v648, %v652
    %v657 = vsub.f32 %v649, %v653
    %v658 = vsub.f32 %v650, %v654
    %v659 = vsub.f32 %v651, %v655
    %v660 = vadd.f32 %v656, 1e-05
    %v661 = vadd.f32 %v657, 1e-05
    %v662 = vadd.f32 %v658, 1e-05
    %v663 = vadd.f32 %v659, 1e-05
    %v664 = vrsqrt.pop %v660
    %v665 = vrsqrt.pop %v661
    %v666 = vrsqrt.pop %v662
    %v667 = vrsqrt.pop %v663
    %v672 = vcombine.low %v664, %v665
    %v673 = vcombine.low %v666, %v667
    %v675 = vunpack.c.l.s4 1966171168
    %v676 = vunpack.c.0.s8 %v675
    %v677 = vlaneseq
    %v678 = vshrl.u32 %v677, 7
    %v679 = vsub.s32 %v676, %v678
    %v680 = vrot.slane %v672, %v679
    %v682 = vunpack.c.l.s4 1966171168
    %v683 = vunpack.c.0.s8 %v682
    %v684 = vlaneseq
    %v685 = vshrl.u32 %v684, 7
    %v686 = vsub.s32 %v683, %v685
    %v687 = vrot.slane %v673, %v686
    %v688 = vcombine.low %v680, %v687
    %v690 = vunpack.c.l.s4 1966171168
    %v691 = vunpack.c.0.s8 %v690
    %v692 = vlaneseq
    %v693 = vshrl.u32 %v692, 7
    %v694 = vsub.s32 %v691, %v693
    %v695 = vrot.slane %v688, %v694
    %v697 = vmul.f32 %v590, %v695
    %v699 = vlaneseq
    %v700 = vshrl.u32 %v699, 7
    %v701 = vsub.s32 0, %v700
    %v702 = vrot.slane %v697, %v701
    %v703 = vlaneseq
    %v704 = vshrl.u32 %v703, 7
    %v705 = vsub.s32 1, %v704
    %v706 = vrot.slane %v697, %v705
    %v707 = vlaneseq
    %v708 = vshrl.u32 %v707, 7
    %v709 = vsub.s32 2, %v708
    %v710 = vrot.slane %v697, %v709
    %v711 = vlaneseq
    %v712 = vshrl.u32 %v711, 7
    %v713 = vsub.s32 3, %v712
    %v714 = vrot.slane %v697, %v713
    %v719 = vmul.f32 %v586, %v702
    %v720 = vmul.f32 %v587, %v706
    %v721 = vmul.f32 %v588, %v710
    %v722 = vmul.f32 %v589, %v714
    %v723 = vmul.f32 %v616, %v702
    %v724 = vmul.f32 %v617, %v706
    %v725 = vmul.f32 %v618, %v710
    %v726 = vmul.f32 %v619, %v714
    %v731 = vcombine.low %v723, %v724
    %v732 = vcombine.low %v725, %v726
    %v734 = vunpack.c.l.s4 1966171168
    %v735 = vunpack.c.0.s8 %v734
    %v736 = vlaneseq
    %v737 = vshrl.u32 %v736, 7
    %v738 = vsub.s32 %v735, %v737
    %v739 = vrot.slane %v731, %v738
    %v741 = vunpack.c.l.s4 1966171168
    %v742 = vunpack.c.0.s8 %v741
    %v743 = vlaneseq
    %v744 = vshrl.u32 %v743, 7
    %v745 = vsub.s32 %v742, %v744
    %v746 = vrot.slane %v732, %v745
    %v747 = vcombine.low %v739, %v746
    %v749 = vunpack.c.l.s4 1966171168
    %v750 = vunpack.c.0.s8 %v749
    %v751 = vlaneseq
    %v752 = vshrl.u32 %v751, 7
    %v753 = vsub.s32 %v750, %v752
    %v754 = vrot.slane %v747, %v753
    %v756 = vsub.f32 %v591, %v754
    %v758 = vlaneseq
    %v759 = vshrl.u32 %v758, 7
    %v760 = vsub.s32 0, %v759
    %v761 = vrot.slane %v756, %v760
    %v762 = vlaneseq
    %v763 = vshrl.u32 %v762, 7
    %v764 = vsub.s32 1, %v763
    %v765 = vrot.slane %v756, %v764
    %v766 = vlaneseq
    %v767 = vshrl.u32 %v766, 7
    %v768 = vsub.s32 2, %v767
    %v769 = vrot.slane %v756, %v768
    %v770 = vlaneseq
    %v771 = vshrl.u32 %v770, 7
    %v772 = vsub.s32 3, %v771
    %v773 = vrot.slane %v756, %v772
    %v778 = vadd.f32 %v719, %v761
    %v779 = vadd.f32 %v720, %v765
    %v780 = vadd.f32 %v721, %v769
    %v781 = vadd.f32 %v722, %v773
    %v782 = vpack.c.bf16 %v778, %v778
    %v783 = vpack.c.bf16 %v779, %v779
    %v784 = vpack.c.bf16 %v780, %v780
    %v785 = vpack.c.bf16 %v781, %v781
    %v786 = vld [vmem:[#allocation13] sm:$0xf]
    %v787 = vld [vmem:[#allocation13 + $0x4] sm:$0xf]
    %v788 = vld [vmem:[#allocation13 + $0x8] sm:$0xf]
    %v789 = vld [vmem:[#allocation13 + $0xc] sm:$0xf]
    %v790 = vld [vmem:[#allocation13 + $0x10] sm:$0xf]
    %v791 = vld [vmem:[#allocation13 + $0x14] sm:$0xf]
    %v792 = vld [vmem:[#allocation13 + $0x18] sm:$0xf]
    %v793 = vld [vmem:[#allocation13 + $0x1c] sm:$0xf]
    %v794 = vld [vmem:[#allocation13 + $0x20] sm:$0xf]
    %v795 = vld [vmem:[#allocation13 + $0x24] sm:$0xf]
    %v796 = vld [vmem:[#allocation13 + $0x28] sm:$0xf]
    %v797 = vld [vmem:[#allocation13 + $0x2c] sm:$0xf]
    %v798 = vld [vmem:[#allocation13 + $0x30] sm:$0xf]
    %v799 = vld [vmem:[#allocation13 + $0x34] sm:$0xf]
    %v800 = vld [vmem:[#allocation13 + $0x38] sm:$0xf]
    %v801 = vld [vmem:[#allocation13 + $0x3c] sm:$0xf]
    %v802 = vld [vmem:[#allocation13 + $0x40] sm:$0xf]
    %v803 = vld [vmem:[#allocation13 + $0x44] sm:$0xf]
    %v804 = vld [vmem:[#allocation13 + $0x48] sm:$0xf]
    %v805 = vld [vmem:[#allocation13 + $0x4c] sm:$0xf]
    %v806 = vld [vmem:[#allocation13 + $0x50] sm:$0xf]
    %v807 = vld [vmem:[#allocation13 + $0x54] sm:$0xf]
    %v808 = vld [vmem:[#allocation13 + $0x58] sm:$0xf]
    %v809 = vld [vmem:[#allocation13 + $0x5c] sm:$0xf]
    %v810 = vld [vmem:[#allocation13 + $0x60] sm:$0xf]
    %v811 = vld [vmem:[#allocation13 + $0x64] sm:$0xf]
    %v812 = vld [vmem:[#allocation13 + $0x68] sm:$0xf]
    %v813 = vld [vmem:[#allocation13 + $0x6c] sm:$0xf]
    %v814 = vld [vmem:[#allocation13 + $0x70] sm:$0xf]
    %v815 = vld [vmem:[#allocation13 + $0x74] sm:$0xf]
    %v816 = vld [vmem:[#allocation13 + $0x78] sm:$0xf]
    %v817 = vld [vmem:[#allocation13 + $0x7c] sm:$0xf]
    %v818 = vld [vmem:[#allocation13 + $0x80] sm:$0xf]
    %v819 = vld [vmem:[#allocation13 + $0x84] sm:$0xf]
    %v820 = vld [vmem:[#allocation13 + $0x88] sm:$0xf]
    %v821 = vld [vmem:[#allocation13 + $0x8c] sm:$0xf]
    %v822 = vld [vmem:[#allocation13 + $0x90] sm:$0xf]
    %v823 = vld [vmem:[#allocation13 + $0x94] sm:$0xf]
    %v824 = vld [vmem:[#allocation13 + $0x98] sm:$0xf]
    %v825 = vld [vmem:[#allocation13 + $0x9c] sm:$0xf]
    %v826 = vld [vmem:[#allocation13 + $0xa0] sm:$0xf]
    %v827 = vld [vmem:[#allocation13 + $0xa4] sm:$0xf]
    %v828 = vld [vmem:[#allocation13 + $0xa8] sm:$0xf]
    %v829 = vld [vmem:[#allocation13 + $0xac] sm:$0xf]
    %v830 = vld [vmem:[#allocation13 + $0xb0] sm:$0xf]
    %v831 = vld [vmem:[#allocation13 + $0xb4] sm:$0xf]
    %v832 = vld [vmem:[#allocation13 + $0xb8] sm:$0xf]
    %v833 = vld [vmem:[#allocation13 + $0xbc] sm:$0xf]
    %v834 = vld [vmem:[#allocation13 + $0xc0] sm:$0xf]
    %v835 = vld [vmem:[#allocation13 + $0xc4] sm:$0xf]
    %v836 = vld [vmem:[#allocation13 + $0xc8] sm:$0xf]
    %v837 = vld [vmem:[#allocation13 + $0xcc] sm:$0xf]
    %v838 = vld [vmem:[#allocation13 + $0xd0] sm:$0xf]
    %v839 = vld [vmem:[#allocation13 + $0xd4] sm:$0xf]
    %v840 = vld [vmem:[#allocation13 + $0xd8] sm:$0xf]
    %v841 = vld [vmem:[#allocation13 + $0xdc] sm:$0xf]
    %v842 = vld [vmem:[#allocation13 + $0xe0] sm:$0xf]
    %v843 = vld [vmem:[#allocation13 + $0xe4] sm:$0xf]
    %v844 = vld [vmem:[#allocation13 + $0xe8] sm:$0xf]
    %v845 = vld [vmem:[#allocation13 + $0xec] sm:$0xf]
    %v846 = vld [vmem:[#allocation13 + $0xf0] sm:$0xf]
    %v847 = vld [vmem:[#allocation13 + $0xf4] sm:$0xf]
    %v848 = vld [vmem:[#allocation13 + $0xf8] sm:$0xf]
    %v849 = vld [vmem:[#allocation13 + $0xfc] sm:$0xf]
    %v850 = vld [vmem:[%s10] sm:$0x1]
    %v852 = vlaneseq
    %v853 = vshrl.u32 %v852, 7
    %v854 = vsub.s32 0, %v853
    %v855 = vrot.slane %v850, %v854
    %v921 = vunpack.c.l.b16 %v786
    %v922 = vunpack.c.l.b16 %v787
    %v923 = vunpack.c.l.b16 %v788
    %v924 = vunpack.c.l.b16 %v789
    %v925 = vunpack.c.l.b16 %v790
    %v926 = vunpack.c.l.b16 %v791
    %v927 = vunpack.c.l.b16 %v792
    %v928 = vunpack.c.l.b16 %v793
    %v929 = vunpack.c.l.b16 %v794
    %v930 = vunpack.c.l.b16 %v795
    %v931 = vunpack.c.l.b16 %v796
    %v932 = vunpack.c.l.b16 %v797
    %v933 = vunpack.c.l.b16 %v798
    %v934 = vunpack.c.l.b16 %v799
    %v935 = vunpack.c.l.b16 %v800
    %v936 = vunpack.c.l.b16 %v801
    %v937 = vunpack.c.l.b16 %v802
    %v938 = vunpack.c.l.b16 %v803
    %v939 = vunpack.c.l.b16 %v804
    %v940 = vunpack.c.l.b16 %v805
    %v941 = vunpack.c.l.b16 %v806
    %v942 = vunpack.c.l.b16 %v807
    %v943 = vunpack.c.l.b16 %v808
    %v944 = vunpack.c.l.b16 %v809
    %v945 = vunpack.c.l.b16 %v810
    %v946 = vunpack.c.l.b16 %v811
    %v947 = vunpack.c.l.b16 %v812
    %v948 = vunpack.c.l.b16 %v813
    %v949 = vunpack.c.l.b16 %v814
    %v950 = vunpack.c.l.b16 %v815
    %v951 = vunpack.c.l.b16 %v816
    %v952 = vunpack.c.l.b16 %v817
    %v953 = vunpack.c.l.b16 %v818
    %v954 = vunpack.c.l.b16 %v819
    %v955 = vunpack.c.l.b16 %v820
    %v956 = vunpack.c.l.b16 %v821
    %v957 = vunpack.c.l.b16 %v822
    %v958 = vunpack.c.l.b16 %v823
    %v959 = vunpack.c.l.b16 %v824
    %v960 = vunpack.c.l.b16 %v825
    %v961 = vunpack.c.l.b16 %v826
    %v962 = vunpack.c.l.b16 %v827
    %v963 = vunpack.c.l.b16 %v828
    %v964 = vunpack.c.l.b16 %v829
    %v965 = vunpack.c.l.b16 %v830
    %v966 = vunpack.c.l.b16 %v831
    %v967 = vunpack.c.l.b16 %v832
    %v968 = vunpack.c.l.b16 %v833
    %v969 = vunpack.c.l.b16 %v834
    %v970 = vunpack.c.l.b16 %v835
    %v971 = vunpack.c.l.b16 %v836
    %v972 = vunpack.c.l.b16 %v837
    %v973 = vunpack.c.l.b16 %v838
    %v974 = vunpack.c.l.b16 %v839
    %v975 = vunpack.c.l.b16 %v840
    %v976 = vunpack.c.l.b16 %v841
    %v977 = vunpack.c.l.b16 %v842
    %v978 = vunpack.c.l.b16 %v843
    %v979 = vunpack.c.l.b16 %v844
    %v980 = vunpack.c.l.b16 %v845
    %v981 = vunpack.c.l.b16 %v846
    %v982 = vunpack.c.l.b16 %v847
    %v983 = vunpack.c.l.b16 %v848
    %v984 = vunpack.c.l.b16 %v849
    %v985 = vpack.c.b16 %v922, %v921
    %v986 = vpack.c.b16 %v924, %v923
    %v987 = vpack.c.b16 %v926, %v925
    %v988 = vpack.c.b16 %v928, %v927
    %v989 = vpack.c.b16 %v930, %v929
    %v990 = vpack.c.b16 %v932, %v931
    %v991 = vpack.c.b16 %v934, %v933
    %v992 = vpack.c.b16 %v936, %v935
    %v993 = vpack.c.b16 %v938, %v937
    %v994 = vpack.c.b16 %v940, %v939
    %v995 = vpack.c.b16 %v942, %v941
    %v996 = vpack.c.b16 %v944, %v943
    %v997 = vpack.c.b16 %v946, %v945
    %v998 = vpack.c.b16 %v948, %v947
    %v999 = vpack.c.b16 %v950, %v949
    %v1000 = vpack.c.b16 %v952, %v951
    %v1001 = vpack.c.b16 %v954, %v953
    %v1002 = vpack.c.b16 %v956, %v955
    %v1003 = vpack.c.b16 %v958, %v957
    %v1004 = vpack.c.b16 %v960, %v959
    %v1005 = vpack.c.b16 %v962, %v961
    %v1006 = vpack.c.b16 %v964, %v963
    %v1007 = vpack.c.b16 %v966, %v965
    %v1008 = vpack.c.b16 %v968, %v967
    %v1009 = vpack.c.b16 %v970, %v969
    %v1010 = vpack.c.b16 %v972, %v971
    %v1011 = vpack.c.b16 %v974, %v973
    %v1012 = vpack.c.b16 %v976, %v975
    %v1013 = vpack.c.b16 %v978, %v977
    %v1014 = vpack.c.b16 %v980, %v979
    %v1015 = vpack.c.b16 %v982, %v981
    %v1016 = vpack.c.b16 %v984, %v983
    %1049 = vmatprep.subr.bf16.mxu0 0
    %1050 = vmatpush1.bf16.msra.mxu0 %v992
    %1051 = vmatprep.subr.bf16.mxu0 0
    %1052 = vmatpush1.bf16.msra.mxu0 %v991
    %1053 = vmatprep.subr.bf16.mxu0 0
    %1054 = vmatpush1.bf16.msra.mxu0 %v990
    %1055 = vmatprep.subr.bf16.mxu0 0
    %1056 = vmatpush1.bf16.msra.mxu0 %v989
    %1057 = vmatprep.subr.bf16.mxu0 0
    %1058 = vmatpush1.bf16.msra.mxu0 %v988
    %1059 = vmatprep.subr.bf16.mxu0 0
    %1060 = vmatpush1.bf16.msra.mxu0 %v987
    %1061 = vmatprep.subr.bf16.mxu0 0
    %1062 = vmatpush1.bf16.msra.mxu0 %v986
    %1063 = vmatprep.subr.bf16.mxu0 0
    %1064 = vmatpush1.bf16.msra.mxu0 %v985
    %1065 = vmatprep.subr.bf16.mxu0 0
    %1066 = vmatpush2.bf16.msra.mxu0 %v1000
    %1067 = vmatprep.subr.bf16.mxu0 0
    %1068 = vmatpush2.bf16.msra.mxu0 %v999
    %1069 = vmatprep.subr.bf16.mxu0 0
    %1070 = vmatpush2.bf16.msra.mxu0 %v998
    %1071 = vmatprep.subr.bf16.mxu0 0
    %1072 = vmatpush2.bf16.msra.mxu0 %v997
    %1073 = vmatprep.subr.bf16.mxu0 0
    %1074 = vmatpush2.bf16.msra.mxu0 %v996
    %1075 = vmatprep.subr.bf16.mxu0 0
    %1076 = vmatpush2.bf16.msra.mxu0 %v995
    %1077 = vmatprep.subr.bf16.mxu0 0
    %1078 = vmatpush2.bf16.msra.mxu0 %v994
    %1079 = vmatprep.subr.bf16.mxu0 0
    %1080 = vmatpush2.bf16.msra.mxu0 %v993
    %1081 = vmatprep.mubr.bf16.mxu0 %v783
    %1082 = vmatmul.mubr.bf16.gmra.mxu0 %v782
    %v1083 = vpop.f32.mrf.mxu0
    %v1084 = vadd.f32 %v855, %v1083
    %v1085 = vpop.f32.mrf.mxu0
    %v1086 = vpop.f32.mrf.mxu0
    %v1087 = vpop.f32.mrf.mxu0
    %1088 = vdwg.mxu0
    %1089 = vmatprep.subr.bf16.mxu0 0
    %1090 = vmatpush1.bf16.msra.mxu0 %v1008
    %1091 = vmatprep.subr.bf16.mxu0 0
    %1092 = vmatpush1.bf16.msra.mxu0 %v1007
    %1093 = vmatprep.subr.bf16.mxu0 0
    %1094 = vmatpush1.bf16.msra.mxu0 %v1006
    %1095 = vmatprep.subr.bf16.mxu0 0
    %1096 = vmatpush1.bf16.msra.mxu0 %v1005
    %1097 = vmatprep.subr.bf16.mxu0 0
    %1098 = vmatpush1.bf16.msra.mxu0 %v1004
    %1099 = vmatprep.subr.bf16.mxu0 0
    %1100 = vmatpush1.bf16.msra.mxu0 %v1003
    %1101 = vmatprep.subr.bf16.mxu0 0
    %1102 = vmatpush1.bf16.msra.mxu0 %v1002
    %1103 = vmatprep.subr.bf16.mxu0 0
    %1104 = vmatpush1.bf16.msra.mxu0 %v1001
    %1105 = vmatprep.subr.bf16.mxu0 0
    %1106 = vmatpush2.bf16.msra.mxu0 %v1016
    %1107 = vmatprep.subr.bf16.mxu0 0
    %1108 = vmatpush2.bf16.msra.mxu0 %v1015
    %1109 = vmatprep.subr.bf16.mxu0 0
    %1110 = vmatpush2.bf16.msra.mxu0 %v1014
    %1111 = vmatprep.subr.bf16.mxu0 0
    %1112 = vmatpush2.bf16.msra.mxu0 %v1013
    %1113 = vmatprep.subr.bf16.mxu0 0
    %1114 = vmatpush2.bf16.msra.mxu0 %v1012
    %1115 = vmatprep.subr.bf16.mxu0 0
    %1116 = vmatpush2.bf16.msra.mxu0 %v1011
    %1117 = vmatprep.subr.bf16.mxu0 0
    %1118 = vmatpush2.bf16.msra.mxu0 %v1010
    %1119 = vmatprep.subr.bf16.mxu0 0
    %1120 = vmatpush2.bf16.msra.mxu0 %v1009
    %1121 = vmatprep.mubr.bf16.mxu0 %v785
    %1122 = vmatmul.mubr.bf16.gmra.mxu0 %v784
    %v1123 = vpop.f32.mrf.mxu0
    %v1124 = vadd.f32 %v1084, %v1123
    %v1125 = vpop.f32.mrf.mxu0
    %v1126 = vpop.f32.mrf.mxu0
    %v1127 = vpop.f32.mrf.mxu0
    %1128 = vdwg.mxu0
    %1129 = vst [vmem:[#allocation14] sm:$0xff] %v1124
    // Predicated region
    $region74: #{tpu_custom_call.1} parent=1 // pred_check
      _
    $region75: #{tpu_custom_call.1} parent=1 // pred_check_branch
      %1131 = sbr.rel (0) target = $region77
    $region76: #{tpu_custom_call.1} parent=1 // pred_region
      %s1133 = ssub.s32 128, 128
      %1134 = vsyncadd [#allocation4], %s1133
      %s1136 = sshll.u32 [#allocation14], 4
      %s1137 = int_to_ptr.vmem [resolvable:$true] %s1136
      %1139 = dma.vmem_to_hbm [thread:$0]  %s1137, 128, %s11, [#allocation4]
    $region77: #{tpu_custom_call.1} parent=1 // pred_fallthru
      _
    // Predicated region
    $region78: #{tpu_custom_call.1} parent=1 // pred_check
      _
    $region79: #{tpu_custom_call.1} parent=1 // pred_check_branch
      %1141 = sbr.rel (0) target = $region81
    $region80: #{tpu_custom_call.1} parent=1 // pred_region
      %1142 = dma.done [#allocation4], 128
    $region81: #{tpu_custom_call.1} parent=1 // pred_fallthru
      _
    %1143 = vsyncpa [#allocation3], 1
    %1144 = vsyncpa [#allocation6], 1
    %1145 = vsyncpa [#allocation9], 1
    %1146 = vsyncpa [#allocation12], 1
    %1147 = vsyncpa [#allocation4], 1

</llo_original>
